<compile_context>
chip_gen: v6e
topology: v6e:2x2x1
jax: 0.10.0
libtpu: 0.0.40
codegen_flags: <defaults>
</compile_context>

<pallas_src>
import jax
import jax.numpy as jnp
from jax.experimental import pallas as pl
from jax.experimental.pallas import tpu as pltpu


def _hswish_kernel(x_ref, o_ref):
    # Compute in f32 (free at the HBM roofline; better precision for bf16/f16,
    # and avoids v5e's missing bf16 VALU), cast back to the output dtype.
    x = x_ref[...].astype(jnp.float32)
    # x * relu6(x + 3) / 6  == x * clamp(x + 3, 0, 6) / 6
    r6 = jnp.minimum(jnp.maximum(x + 3.0, 0.0), 6.0)
    o_ref[...] = ((x * r6) / 6.0).astype(o_ref.dtype)


def _hswish_ref(x):
    return x * jnp.clip(x + 3.0, 0.0, 6.0) / 6.0


_LANE = 128
_MIB = 1024 * 1024

# Conservative defaults if the hardware query is unavailable.
_DEFAULT_TILE_BYTES = 8 * _MIB
_DEFAULT_VMEM_LIMIT = 48 * _MIB

_TUNING_CACHE = None


def _tpu_tuning():
    """(target_tile_bytes, vmem_limit_bytes), branched on physical VMEM size."""
    global _TUNING_CACHE
    if _TUNING_CACHE is not None:
        return _TUNING_CACHE
    tile_bytes, vmem_limit = _DEFAULT_TILE_BYTES, _DEFAULT_VMEM_LIMIT
    try:
        info = pltpu.get_tpu_info()
        vmem_cap = getattr(info, "vmem_capacity_bytes", None)
        if vmem_cap is not None:
            if vmem_cap > 96 * _MIB:
                # v5e / v6e class: 128 MiB physical VMEM.  8 MiB blocks
                # (32 MiB resident double-buffered) under a 64 MiB scoped
                # limit — NOT portable to v7x, hence the branch.
                tile_bytes, vmem_limit = 8 * _MIB, 64 * _MIB
            else:
                # v7x class: 64 MiB physical VMEM.  8 MiB blocks, 48 MiB
                # scoped limit leaves headroom for internal scratch.
                tile_bytes, vmem_limit = 8 * _MIB, 48 * _MIB
    except Exception:
        pass  # keep conservative defaults
    _TUNING_CACHE = (tile_bytes, vmem_limit)
    return _TUNING_CACHE


def _pick_tile_rows(rows, sub_min, target_rows):
    """Search near target_rows for a sub_min-multiple that divides rows exactly.

    Prefers an exact divisor giving an even block count (balanced across v7x's
    two TensorCores), then the largest exact divisor in [target/2, target],
    otherwise returns target_rows (ragged cdiv grid, masked last block)."""
    lo = max(sub_min, (target_rows // 2 // sub_min) * sub_min)
    best = None
    cand = target_rows
    while cand >= lo:
        if rows % cand == 0:
            if best is None:
                best = cand
            if (rows // cand) % 2 == 0:
                return cand  # largest even-block-count divisor in window
        cand -= sub_min
    return best if best is not None else target_rows


def hswish(x):
    """Hard-swish on an arbitrary-shape tensor (e.g. NCHW) via a Pallas TPU kernel."""
    orig_shape = x.shape
    dtype = x.dtype
    total = x.size
    itemsize = jnp.dtype(dtype).itemsize

    # Float-only for the Pallas path: integer hardswish is not PyTorch's
    # quantized semantics, so let the (type-promoting) reference handle it.
    if not jnp.issubdtype(dtype, jnp.floating):
        return _hswish_ref(x)

    # Packed-sublane minimum rows: 8 (f32), 16 (bf16/f16).
    sub_min = max(8, 32 // itemsize)
    min_chunk = sub_min * _LANE

    if total == 0 or total % min_chunk != 0:
        # Tiny / unaligned totals: fused XLA elementwise is already optimal and
        # avoids padding copies (pad-concat + tail-slice would double HBM traffic).
        return _hswish_ref(x)

    tile_bytes, vmem_limit = _tpu_tuning()

    # Widest lane-dense column count that keeps rows a multiple of sub_min.
    cols = _LANE
    for cand in (8192, 4096, 2048, 1024, 512, 256, 128):
        if total % (cand * sub_min) == 0:
            cols = cand
            break
    rows = total // cols

    # Multi-MiB row tiles, rounded to the packed-sublane minimum.
    tile_r = min(rows, max(sub_min, tile_bytes // (cols * itemsize)))
    # Guarantee >= 2 grid blocks whenever possible so both v7x TensorCores
    # (and their DMA bandwidth) stream; single-block grids leave one TC idle.
    if rows >= 2 * sub_min:
        tile_r = min(tile_r, max(sub_min, (rows // 2 // sub_min) * sub_min))
    tile_r = max(sub_min, (tile_r // sub_min) * sub_min)
    # Prefer an exact-divisor tile (unmasked stores, balanced shards).
    tile_r = _pick_tile_rows(rows, sub_min, tile_r)

    grid = (pl.cdiv(rows, tile_r),)  # ragged final block (if any) is masked by Pallas

    x2d = jnp.reshape(x, (rows, cols))  # contiguous reshape: no copy

    out2d = pl.pallas_call(
        _hswish_kernel,
        out_shape=jax.ShapeDtypeStruct((rows, cols), dtype),
        grid_spec=pltpu.PrefetchScalarGridSpec(
            num_scalar_prefetch=0,
            grid=grid,
            # Default double buffering: DMA-bound, compute fully hidden.
            in_specs=[pl.BlockSpec((tile_r, cols), lambda i: (i, 0))],
            out_specs=pl.BlockSpec((tile_r, cols), lambda i: (i, 0)),
        ),
        compiler_params=pltpu.CompilerParams(
            dimension_semantics=("parallel",),
            vmem_limit_bytes=vmem_limit,
        ),
        cost_estimate=pl.CostEstimate(
            flops=5 * total,
            transcendentals=0,
            bytes_accessed=2 * total * itemsize,
        ),
    )(x2d)

    return jnp.reshape(out2d, orig_shape)


if __name__ == "__main__":
    key = jax.random.PRNGKey(0)

    # NCHW, matching PyTorch conv-feature-map convention (small test shape).
    # total=2048 -> cols=128, rows=16, tile_r=8 -> grid=(2,) (multi-block even on tiny input).
    x = jax.random.normal(key, (2, 4, 16, 16), dtype=jnp.float32) * 4.0
    y = hswish(x)
    jax.block_until_ready(y)
    ref = _hswish_ref(x)
    assert y.shape == x.shape and y.dtype == x.dtype
    assert jnp.allclose(y, ref, atol=1e-6), "mismatch vs reference (small)"

    # Larger aligned tensor: wide-lane slab (cols=8192), exact-divisor even grid.
    x_big = jax.random.normal(jax.random.PRNGKey(1), (8, 16, 128, 256),
                              dtype=jnp.float32) * 4.0
    y_big = hswish(x_big)
    jax.block_until_ready(y_big)
    assert jnp.allclose(y_big, _hswish_ref(x_big), atol=1e-5), "mismatch (big)"

    # bf16 input: exercises the in-kernel f32 upcast path.
    x_bf16 = (jax.random.normal(jax.random.PRNGKey(3), (4, 8, 32, 64),
                                dtype=jnp.float32) * 4.0).astype(jnp.bfloat16)
    y_bf16 = hswish(x_bf16)
    jax.block_until_ready(y_bf16)
    assert y_bf16.dtype == jnp.bfloat16
    ref_bf16 = _hswish_ref(x_bf16.astype(jnp.float32))
    assert jnp.allclose(y_bf16.astype(jnp.float32), ref_bf16, atol=2e-2), "mismatch (bf16)"

    # Unaligned total: exercises the fused-XLA fallback path (no padding copies).
    x_odd = jax.random.normal(jax.random.PRNGKey(2), (3, 5, 7, 11),
                              dtype=jnp.float32) * 4.0
    y_odd = hswish(x_odd)
    jax.block_until_ready(y_odd)
    assert jnp.allclose(y_odd, _hswish_ref(x_odd), atol=1e-6), "mismatch (odd)"

    print("KERNEL_OK")
</pallas_src>

<mosaic_0001>
module attributes {stable_mosaic.version = 11 : i64} {
  func.func @_hswish_kernel(%arg0: i32, %arg1: memref<8x256xf32, #tpu.memory_space<vmem>>, %arg2: memref<8x256xf32, #tpu.memory_space<vmem>>) attributes {dimension_semantics = [#tpu.dimension_semantics<parallel>], iteration_bounds = array<i64: 1>, scalar_prefetch = 0 : i64, scratch_operands = 0 : i64, tpu.core_type = #tpu.core_type<tc>, window_params = [{transform_indices = @transform_0, window_bounds = array<i64: 8, 256>}, {transform_indices = @transform_1, window_bounds = array<i64: 8, 256>}]} {
    %c0 = arith.constant 0 : index
    %c0_0 = arith.constant 0 : index
    %0 = vector.load %arg1[%c0, %c0_0] : memref<8x256xf32, #tpu.memory_space<vmem>>, vector<8x256xf32>
    %cst = arith.constant 3.000000e+00 : f32
    %1 = vector.broadcast %cst : f32 to vector<8x256xf32>
    %2 = arith.addf %0, %1 : vector<8x256xf32>
    %cst_1 = arith.constant 0.000000e+00 : f32
    %3 = vector.broadcast %cst_1 : f32 to vector<8x256xf32>
    %4 = arith.maximumf %2, %3 : vector<8x256xf32>
    %cst_2 = arith.constant 6.000000e+00 : f32
    %5 = vector.broadcast %cst_2 : f32 to vector<8x256xf32>
    %6 = arith.minimumf %4, %5 : vector<8x256xf32>
    %7 = arith.mulf %0, %6 : vector<8x256xf32>
    %cst_3 = arith.constant 6.000000e+00 : f32
    %8 = vector.broadcast %cst_3 : f32 to vector<8x256xf32>
    %9 = arith.divf %7, %8 : vector<8x256xf32>
    %c0_4 = arith.constant 0 : index
    %c0_5 = arith.constant 0 : index
    %10 = vector.load %arg2[%c0_4, %c0_5] : memref<8x256xf32, #tpu.memory_space<vmem>>, vector<8x256xf32>
    tpu.vector_store %arg2[%c0_4, %c0_5], %9 {strides = array<i32>} : memref<8x256xf32, #tpu.memory_space<vmem>>, vector<8x256xf32>,
    return
  }
  func.func @transform_0(%arg0: i32) -> (i32, i32) {
    %c0_i32 = arith.constant 0 : i32
    %c0_i32_0 = arith.constant 0 : i32
    return %arg0, %c0_i32 : i32, i32
  }
  func.func @transform_1(%arg0: i32) -> (i32, i32) {
    %c0_i32 = arith.constant 0 : i32
    %c0_i32_0 = arith.constant 0 : i32
    return %arg0, %c0_i32 : i32, i32
  }
}

</mosaic_0001>

<llo_original>
// kernel: tpu_custom_call.1
$region0: #{tpu_custom_call.1}
  #allocation0 [shape = 'u32[]', space=smem, size = 0x4, offset = 0x4, fixed_abs, tag = 'smem constant byte address 0x4 - core index']
  #allocation1 [shape = 'u32[144,128]{1,0:T(1,128)}', space=vmem, size = 0x12000, scoped, tag = 'internal scratch']
  %s0 = inlined_call_operand.hbm [shape: f32[8,256], index: 0, kind: input, shape index: {}]
  %s1 = inlined_call_operand.hbm [shape: f32[8,256], index: 1, kind: output, shape index: {}]
  %s2 = sld [smem:[#allocation0]]
  $region18: #{tpu_custom_call.1} parent=0
    _
  %s4 = ssub.s32 1, %s2
  %s5 = scalar_select 0, %s4, %s2
  $region1: #{tpu_custom_call.1} parent=0
    #allocation2 [shape = 'u8[8192]{0}', space=vmem, size = 0x2000, scoped, tag = 'input window, operand 0, single buffered']
    #allocation3 [shape = 's32[1]{0}', space=sflag, size = 0x4, scoped, tag = 'scoped memory for tpu_custom_call.1']
    #allocation4 [shape = 's32[1]{0}', space=sflag, size = 0x4, scoped, tag = 'scoped memory for tpu_custom_call.1']
    #allocation5 [shape = 'u8[8192]{0}', space=vmem, size = 0x2000, scoped, tag = 'output window, operand 0, single buffered']
    %6 = vsyncpa [#allocation3], 0
    %7 = vsyncpa [#allocation4], 0
    // Predicated region
    $region2: #{tpu_custom_call.1} parent=1 // pred_check
      _
    $region3: #{tpu_custom_call.1} parent=1 // pred_check_branch
      %9 = sbr.rel (0) target = $region5
    $region4: #{tpu_custom_call.1} parent=1 // pred_region
      %s11 = ssub.s32 256, 256
      %12 = vsyncadd [#allocation3], %s11
      %s14 = sshll.u32 [#allocation2], 4
      %s15 = int_to_ptr.vmem [resolvable:$true] %s14
      %17 = dma.hbm_to_vmem [thread:$0]  %s0, 256, %s15, [#allocation3]
    $region5: #{tpu_custom_call.1} parent=1 // pred_fallthru
      _
    // Predicated region
    $region6: #{tpu_custom_call.1} parent=1 // pred_check
      _
    $region7: #{tpu_custom_call.1} parent=1 // pred_check_branch
      %19 = sbr.rel (0) target = $region9
    $region8: #{tpu_custom_call.1} parent=1 // pred_region
      %20 = dma.done [#allocation3], 256
    $region9: #{tpu_custom_call.1} parent=1 // pred_fallthru
      _
    %v21 = vld [vmem:[#allocation2] sm:$0xff]
    %v22 = vld [vmem:[#allocation2 + $0x8] sm:$0xff]
    %v23 = vadd.f32 %v21, 3.0
    %v24 = vadd.f32 %v22, 3.0
    %v25 = vmax.f32 %v23, 0.0
    %v26 = vmax.f32 %v24, 0.0
    %v27 = vmin.f32 %v25, 6.0
    %v28 = vmin.f32 %v26, 6.0
    %v29 = vmul.f32 %v21, %v27
    %v30 = vmul.f32 %v22, %v28
    %v31 = vrcp.pop 6.0
    %v32 = vmul.f32 %v29, %v31
    %v33 = vmul.f32 %v30, %v31
    %34 = vst [vmem:[#allocation5] sm:$0xff] %v32
    %35 = vst [vmem:[#allocation5 + $0x8] sm:$0xff] %v33
    // Predicated region
    $region10: #{tpu_custom_call.1} parent=1 // pred_check
      _
    $region11: #{tpu_custom_call.1} parent=1 // pred_check_branch
      %37 = sbr.rel (0) target = $region13
    $region12: #{tpu_custom_call.1} parent=1 // pred_region
      %s39 = ssub.s32 256, 256
      %40 = vsyncadd [#allocation4], %s39
      %s42 = sshll.u32 [#allocation5], 4
      %s43 = int_to_ptr.vmem [resolvable:$true] %s42
      %45 = dma.vmem_to_hbm [thread:$0]  %s43, 256, %s1, [#allocation4]
    $region13: #{tpu_custom_call.1} parent=1 // pred_fallthru
      _
    // Predicated region
    $region14: #{tpu_custom_call.1} parent=1 // pred_check
      _
    $region15: #{tpu_custom_call.1} parent=1 // pred_check_branch
      %47 = sbr.rel (0) target = $region17
    $region16: #{tpu_custom_call.1} parent=1 // pred_region
      %48 = dma.done [#allocation4], 256
    $region17: #{tpu_custom_call.1} parent=1 // pred_fallthru
      _
    %49 = vsyncpa [#allocation3], 1
    %50 = vsyncpa [#allocation4], 1

</llo_original>
